<compile_context>
chip_gen: v7x
topology: tpu7x:2x2x1
jax: 0.10.0
libtpu: 0.0.40
codegen_flags: <defaults>
</compile_context>

<pallas_src>
import math

import jax
import jax.numpy as jnp
from jax.experimental import pallas as pl
from jax.experimental.pallas import tpu as pltpu


# Budget keyed to the smallest per-TensorCore VMEM (v7x: 64 MiB/TC); v5e/v6e
# (128 MiB) simply run with extra headroom.
_VMEM_PHYS_BYTES = 64 * 1024 * 1024
_VMEM_BLOCK_BUDGET = int(_VMEM_PHYS_BYTES * 0.55)     # ~35 MiB of blocks + temps


def _round_up(x, m):
    return -(-x // m) * m


def _vmem_need_bytes(tm, B, E, H, x_sz, w_sz):
    """Conservative per-call VMEM estimate: every block double-buffered,
    lane dims padded to 128, plus the f32 matmul/tanh intermediates."""
    Ep, Hp = _round_up(E, 128), _round_up(H, 128)
    Bp = _round_up(max(B, 8), 8)
    tmp = _round_up(tm, 8)
    return (2 * tmp * Ep * x_sz            # x stream, double-buffered
            + 2 * Ep * Hp * w_sz           # W_enc^T block
            + 2 * tmp * Hp * 4             # f32 dot result / tanh intermediate
            + 2 * Bp * Hp * 4              # hidden-bias table
            + 2 * 8 * Hp * 4               # v row (sublane padded)
            + 2 * tmp * 128 * 4            # (tm, 1) output blocks (lane padded)
            + (1 << 20))                   # slack for small temporaries


def _pick_row_tile(M, B, E, H, x_sz, w_sz, vmem_budget):
    """Rows per tile: multiple of B (bias period) and of the stream dtype's
    sublane packing (8 f32 / 16 bf16), capped at 2048 rows and by the VMEM
    budget; split into >= 2 blocks when possible so both v7x TCs get work."""
    pack = max(8, 32 // x_sz)
    align = (B * pack) // math.gcd(B, pack)

    if M <= align:
        return M                                   # single full-extent block

    tm = min(2048, _round_up(M, align))
    tm = max(align, (tm // align) * align)
    while tm > align and _vmem_need_bytes(tm, B, E, H, x_sz, w_sz) > vmem_budget:
        tm -= align

    if tm >= M:
        # One block would leave the second TensorCore idle: split ~in half.
        tm = _round_up(-(-M // 2), align)
    return tm


def _make_kernel(B):
    def kernel(x_ref, w_ref, hb_ref, v_ref, o_ref):
        # x_ref : (tm, E)   encoder rows (row r -> batch r % B), f32 or bf16
        # w_ref : (E, H)    pre-transposed encoder half of W.weight (x dtype)
        # hb_ref: (Bp, H)   f32 hidden-projection bias table (rows >= B zero)
        # v_ref : (1, H)    f32 v.weight
        # o_ref : (tm, 1)   f32 scores
        tm = x_ref.shape[0]

        # MXU: (tm, E) @ (E, H) with f32 accumulation; no per-step transpose.
        s = jnp.dot(x_ref[...], w_ref[...], preferred_element_type=jnp.float32)

        # Per-row hidden bias rebuilt from the tiny table (bias[r] = hb[r % B]).
        # tm is always a multiple of B (single block: tm == S*B; tiled: tm is
        # a multiple of lcm(B, pack)), so the in-tile row index is enough.
        if B == 1:
            bias = hb_ref[0:1, :]                      # (1, H) sublane-broadcast
        else:
            Bp = hb_ref.shape[0]
            rb = jax.lax.broadcasted_iota(jnp.int32, (tm, Bp), 0) % B
            cb = jax.lax.broadcasted_iota(jnp.int32, (tm, Bp), 1)
            onehot = jnp.where(rb == cb, 1.0, 0.0)     # (tm, Bp), exact 0/1 f32
            bias = jnp.dot(onehot, hb_ref[...],
                           preferred_element_type=jnp.float32)   # (tm, H)

        t = jnp.tanh(s + bias)                         # VPU add + EUP tanh, f32
        # v-projection: VPU multiply + lane reduction (XLU); keeps the MXU free.
        o_ref[...] = jnp.sum(t * v_ref[...], axis=-1, keepdims=True)
    return kernel


def concat_attention(hidden, encoder_outputs, W_weight, v_weight,
                     stream_dtype=jnp.bfloat16):
    """hidden: (1, B, D), encoder_outputs: (S, B, E) -> (B, S) scores.

    stream_dtype: dtype of the HBM-streamed encoder slab / W_enc (default bf16;
    accumulation, bias add, tanh and the v-reduce are always f32).
    """
    S, B, E = encoder_outputs.shape
    H = W_weight.shape[0]
    M = S * B
    x_sz = jnp.dtype(stream_dtype).itemsize
    w_sz = x_sz

    # Split projection: W(cat([enc, h])) == enc @ W[:, :E].T + h @ W[:, E:].T.
    # Hidden half is tiny -> computed once here at full f32 precision.
    W_enc_T = W_weight[:, :E].T.astype(stream_dtype)                  # (E, H)
    hbias = jnp.dot(hidden[0], W_weight[:, E:].T,
                    precision=jax.lax.Precision.HIGHEST)              # (B, H) f32
    Bp = _round_up(max(B, 8), 8)
    hbias_pad = jnp.pad(hbias.astype(jnp.float32), ((0, Bp - B), (0, 0)))
    v_row = v_weight.reshape(1, H).astype(jnp.float32)

    # Free row-major flatten (no transpose, no concat slab): row r -> batch r % B.
    x = encoder_outputs.reshape(M, E).astype(stream_dtype)

    tm = _pick_row_tile(M, B, E, H, x_sz, w_sz, _VMEM_BLOCK_BUDGET)
    need = _vmem_need_bytes(tm, B, E, H, x_sz, w_sz)
    vmem_limit = max(32 * 1024 * 1024,
                     min(int(_VMEM_PHYS_BYTES * 0.85), need + (8 << 20)))

    out = pl.pallas_call(
        _make_kernel(B),
        out_shape=jax.ShapeDtypeStruct((M, 1), jnp.float32),
        grid=(pl.cdiv(M, tm),),
        in_specs=[
            pl.BlockSpec((tm, E), lambda i: (i, 0)),   # streamed, double-buffered
            pl.BlockSpec((E, H), lambda i: (0, 0)),    # VMEM-resident W_enc^T
            pl.BlockSpec((Bp, H), lambda i: (0, 0)),   # tiny resident bias table
            pl.BlockSpec((1, H), lambda i: (0, 0)),    # resident v row
        ],
        out_specs=pl.BlockSpec((tm, 1), lambda i: (i, 0)),
        compiler_params=pltpu.CompilerParams(
            dimension_semantics=("parallel",),         # shard row tiles across TCs
            vmem_limit_bytes=int(vmem_limit)),
    )(x, W_enc_T, hbias_pad, v_row)

    # squeeze(2).transpose(0, 1): (S*B, 1) -> (S, B) -> (B, S)   (tiny)
    return out.reshape(S, B).T


def init_params(key, hidden_size, encoder_hidden_size, decoder_hidden_size):
    """Deterministic init matching nn.Linear default (uniform +-1/sqrt(fan_in))."""
    kW, kv = jax.random.split(key)
    in_f = encoder_hidden_size + decoder_hidden_size
    bW = 1.0 / (in_f ** 0.5)
    bv = 1.0 / (hidden_size ** 0.5)
    W = jax.random.uniform(kW, (hidden_size, in_f), jnp.float32, -bW, bW)
    v = jax.random.uniform(kv, (1, hidden_size), jnp.float32, -bv, bv)
    return W, v


def reference(hidden, encoder_outputs, W, v):
    S, B, E = encoder_outputs.shape
    h = jnp.broadcast_to(hidden, (S, B, hidden.shape[-1]))
    cat = jnp.concatenate([encoder_outputs, h], axis=2)
    hp = jax.lax.Precision.HIGHEST
    t = jnp.tanh(jnp.einsum("sbf,hf->sbh", cat, W, precision=hp))
    scores = jnp.einsum("sbh,oh->sbo", t, v, precision=hp)
    return scores[..., 0].T


if __name__ == "__main__":
    # Small shapes consistent with the module's forward.
    seq_len, batch = 8, 2
    encoder_hidden, decoder_hidden, hidden_size = 32, 32, 32

    key = jax.random.PRNGKey(0)
    k_enc, k_hid, k_par = jax.random.split(key, 3)

    encoder_outputs = jax.random.normal(k_enc, (seq_len, batch, encoder_hidden),
                                        dtype=jnp.float32)
    hidden = jax.random.normal(k_hid, (1, batch, decoder_hidden), dtype=jnp.float32)
    W, v = init_params(k_par, hidden_size, encoder_hidden, decoder_hidden)

    ref = reference(hidden, encoder_outputs, W, v)

    # Default path: bf16 streaming of x / W_enc, f32 accumulate / tanh / reduce.
    out_bf16 = jax.block_until_ready(
        concat_attention(hidden, encoder_outputs, W, v))
    assert out_bf16.shape == (batch, seq_len), out_bf16.shape
    assert jnp.allclose(out_bf16, ref, atol=3e-2, rtol=3e-2), "bf16 mismatch vs reference"

    # f32 streaming path (exact semantics of the PyTorch module).
    out_f32 = jax.block_until_ready(
        concat_attention(hidden, encoder_outputs, W, v, stream_dtype=jnp.float32))
    assert out_f32.shape == (batch, seq_len), out_f32.shape
    assert jnp.allclose(out_f32, ref, atol=2e-5, rtol=2e-5), "f32 mismatch vs reference"

    print("KERNEL_OK")
</pallas_src>

<mosaic_0001>
module attributes {stable_mosaic.version = 11 : i64} {
  func.func @kernel(%arg0: i32, %arg1: memref<16x32xbf16, #tpu.memory_space<vmem>>, %arg2: memref<32x32xbf16, #tpu.memory_space<vmem>>, %arg3: memref<8x32xf32, #tpu.memory_space<vmem>>, %arg4: memref<1x32xf32, #tpu.memory_space<vmem>>, %arg5: memref<16x1xf32, #tpu.memory_space<vmem>>) attributes {dimension_semantics = [#tpu.dimension_semantics<parallel>], iteration_bounds = array<i64: 1>, scalar_prefetch = 0 : i64, scratch_operands = 0 : i64, tpu.core_type = #tpu.core_type<tc>, window_params = [{transform_indices = @transform_0, window_bounds = array<i64: 16, 32>}, {pipeline_mode = #tpu.pipeline_mode<synchronous>, transform_indices = @transform_1, window_bounds = array<i64: 32, 32>}, {pipeline_mode = #tpu.pipeline_mode<synchronous>, transform_indices = @transform_2, window_bounds = array<i64: 8, 32>}, {pipeline_mode = #tpu.pipeline_mode<synchronous>, transform_indices = @transform_3, window_bounds = array<i64: 1, 32>}, {transform_indices = @transform_4, window_bounds = array<i64: 16, 1>}]} {
    %c0 = arith.constant 0 : index
    %c0_0 = arith.constant 0 : index
    %0 = vector.load %arg1[%c0, %c0_0] : memref<16x32xbf16, #tpu.memory_space<vmem>>, vector<16x32xbf16>
    %c0_1 = arith.constant 0 : index
    %c0_2 = arith.constant 0 : index
    %1 = vector.load %arg2[%c0_1, %c0_2] : memref<32x32xbf16, #tpu.memory_space<vmem>>, vector<32x32xbf16>
    %cst = arith.constant dense<0.000000e+00> : vector<16x32xf32>
    %2 = tpu.matmul %0, %1, %cst {dimension_numbers = #tpu.dot_dimension_numbers<[1], [0], [0], [1], [0, 0, 1, 1], [], []>} : vector<16x32xbf16>, vector<32x32xbf16>, vector<16x32xf32> -> vector<16x32xf32>
    %3 = tpu.iota {dimensions = array<i32: 0>} : vector<16x8xi32>
    %c2_i32 = arith.constant 2 : i32
    %c0_i32 = arith.constant 0 : i32
    %4 = arith.cmpi eq, %c2_i32, %c0_i32 : i32
    %c1_i32 = arith.constant 1 : i32
    %5 = arith.select %4, %c1_i32, %c2_i32 : i32
    %6 = vector.broadcast %5 : i32 to vector<16x8xi32>
    %7 = arith.remsi %3, %6 : vector<16x8xi32>
    %c0_i32_3 = arith.constant 0 : i32
    %8 = vector.broadcast %c0_i32_3 : i32 to vector<16x8xi32>
    %9 = arith.cmpi ne, %7, %8 : vector<16x8xi32>
    %c0_i32_4 = arith.constant 0 : i32
    %10 = vector.broadcast %c0_i32_4 : i32 to vector<16x8xi32>
    %11 = arith.cmpi slt, %7, %10 : vector<16x8xi32>
    %c0_i32_5 = arith.constant 0 : i32
    %12 = arith.cmpi slt, %5, %c0_i32_5 : i32
    %13 = vector.broadcast %12 : i1 to vector<16x8xi1>
    %14 = vector.broadcast %13 : vector<16x8xi1> to vector<16x8xi1>
    %15 = arith.xori %11, %14 : vector<16x8xi1>
    %16 = arith.andi %15, %9 : vector<16x8xi1>
    %17 = vector.broadcast %5 : i32 to vector<16x8xi32>
    %18 = arith.addi %7, %17 : vector<16x8xi32>
    %19 = arith.select %16, %18, %7 : vector<16x8xi1>, vector<16x8xi32>
    %20 = tpu.iota {dimensions = array<i32: 1>} : vector<16x8xi32>
    %21 = arith.cmpi eq, %19, %20 : vector<16x8xi32>
    %cst_6 = arith.constant 1.000000e+00 : f32
    %cst_7 = arith.constant 0.000000e+00 : f32
    %22 = vector.broadcast %cst_6 : f32 to vector<16x8xf32>
    %23 = vector.broadcast %cst_7 : f32 to vector<16x8xf32>
    %24 = arith.select %21, %22, %23 : vector<16x8xi1>, vector<16x8xf32>
    %c0_8 = arith.constant 0 : index
    %c0_9 = arith.constant 0 : index
    %25 = vector.load %arg3[%c0_8, %c0_9] : memref<8x32xf32, #tpu.memory_space<vmem>>, vector<8x32xf32>
    %cst_10 = arith.constant dense<0.000000e+00> : vector<16x32xf32>
    %26 = tpu.matmul %24, %25, %cst_10 {dimension_numbers = #tpu.dot_dimension_numbers<[1], [0], [0], [1], [0, 0, 1, 1], [], []>} : vector<16x8xf32>, vector<8x32xf32>, vector<16x32xf32> -> vector<16x32xf32>
    %27 = arith.addf %2, %26 : vector<16x32xf32>
    %28 = math.tanh %27 : vector<16x32xf32>
    %c0_11 = arith.constant 0 : index
    %c0_12 = arith.constant 0 : index
    %29 = vector.load %arg4[%c0_11, %c0_12] : memref<1x32xf32, #tpu.memory_space<vmem>>, vector<1x32xf32>
    %30 = vector.broadcast %29 : vector<1x32xf32> to vector<16x32xf32>
    %31 = arith.mulf %28, %30 : vector<16x32xf32>
    %cst_13 = arith.constant dense<0.000000e+00> : vector<16xf32>
    %32 = vector.multi_reduction <add>, %31, %cst_13 [1] : vector<16x32xf32> to vector<16xf32>
    %33 = vector.shape_cast %32 : vector<16xf32> to vector<16x1xf32>
    %c0_14 = arith.constant 0 : index
    %c0_15 = arith.constant 0 : index
    %34 = vector.load %arg5[%c0_14, %c0_15] : memref<16x1xf32, #tpu.memory_space<vmem>>, vector<16x1xf32>
    tpu.vector_store %arg5[%c0_14, %c0_15], %33 {strides = array<i32>} : memref<16x1xf32, #tpu.memory_space<vmem>>, vector<16x1xf32>,
    return
  }
  func.func @transform_0(%arg0: i32) -> (i32, i32) {
    %c0_i32 = arith.constant 0 : i32
    %c0_i32_0 = arith.constant 0 : i32
    return %arg0, %c0_i32 : i32, i32
  }
  func.func @transform_1(%arg0: i32) -> (i32, i32) {
    %c0_i32 = arith.constant 0 : i32
    %c0_i32_0 = arith.constant 0 : i32
    %c0_i32_1 = arith.constant 0 : i32
    return %c0_i32, %c0_i32_0 : i32, i32
  }
  func.func @transform_2(%arg0: i32) -> (i32, i32) {
    %c0_i32 = arith.constant 0 : i32
    %c0_i32_0 = arith.constant 0 : i32
    %c0_i32_1 = arith.constant 0 : i32
    return %c0_i32, %c0_i32_0 : i32, i32
  }
  func.func @transform_3(%arg0: i32) -> (i32, i32) {
    %c0_i32 = arith.constant 0 : i32
    %c0_i32_0 = arith.constant 0 : i32
    %c0_i32_1 = arith.constant 0 : i32
    return %c0_i32, %c0_i32_0 : i32, i32
  }
  func.func @transform_4(%arg0: i32) -> (i32, i32) {
    %c0_i32 = arith.constant 0 : i32
    %c0_i32_0 = arith.constant 0 : i32
    return %arg0, %c0_i32 : i32, i32
  }
}

</mosaic_0001>

<llo_original>
// kernel: tpu_custom_call.1
$region0: #{tpu_custom_call.1}
  #allocation0 [shape = 'u32[]', space=smem, size = 0x4, offset = 0x4, fixed_abs, tag = 'smem constant byte address 0x4 - core index']
  #allocation1 [shape = 'u32[144,128]{1,0:T(1,128)}', space=vmem, size = 0x12000, scoped, tag = 'internal scratch']
  %s0 = inlined_call_operand.hbm [shape: bf16[16,32], index: 0, kind: input, shape index: {}]
  %s1 = inlined_call_operand.hbm [shape: bf16[32,32], index: 1, kind: input, shape index: {}]
  %s2 = inlined_call_operand.hbm [shape: f32[8,32], index: 2, kind: input, shape index: {}]
  %s3 = inlined_call_operand.vmem [shape: f32[1,32], index: 3, kind: input, shape index: {}]
  %s4 = inlined_call_operand.vmem [shape: f32[16,1], index: 4, kind: output, shape index: {}]
  %s5 = sld [smem:[#allocation0]]
  $region38: #{tpu_custom_call.1} parent=0
    _
  %s7 = ssub.s32 1, %s5
  %s8 = scalar_select 0, %s7, %s5
  $region1: #{tpu_custom_call.1} parent=0
    #allocation2 [shape = 'u8[4096]{0}', space=vmem, size = 0x1000, scoped, tag = 'input window, operand 0, single buffered']
    #allocation3 [shape = 's32[1]{0}', space=sflag, size = 0x4, scoped, tag = 'scoped memory for tpu_custom_call.1']
    #allocation4 [shape = 'u8[8192]{0}', space=vmem, size = 0x2000, scoped, tag = 'input window, operand 1, single buffered']
    #allocation5 [shape = 's32[1]{0}', space=sflag, size = 0x4, scoped, tag = 'scoped memory for tpu_custom_call.1']
    #allocation6 [shape = 'u8[4096]{0}', space=vmem, size = 0x1000, scoped, tag = 'input window, operand 2, single buffered']
    %9 = vsyncpa [#allocation3], 0
    %10 = vsyncpa [#allocation5], 0
    // Predicated region
    $region2: #{tpu_custom_call.1} parent=1 // pred_check
      _
    $region3: #{tpu_custom_call.1} parent=1 // pred_check_branch
      %12 = sbr.rel (0) target = $region5
    $region4: #{tpu_custom_call.1} parent=1 // pred_region
      %s14 = ssub.s32 128, 128
      %15 = vsyncadd [#allocation3], %s14
      %s16 = sshll.u32 [#allocation2], 4
      %s17 = int_to_ptr.vmem [resolvable:$true] %s16
      %22 = dma.hbm_to_vmem [thread:$0]  %s0, 128, %s17, [#allocation3], 64, 64, 4
    $region5: #{tpu_custom_call.1} parent=1 // pred_fallthru
      _
    // Predicated region
    $region6: #{tpu_custom_call.1} parent=1 // pred_check
      _
    $region7: #{tpu_custom_call.1} parent=1 // pred_check_branch
      %24 = sbr.rel (0) target = $region9
    $region8: #{tpu_custom_call.1} parent=1 // pred_region
      %s26 = ssub.s32 256, 256
      %27 = vsyncadd [#allocation5], %s26
      %s28 = sshll.u32 [#allocation4], 4
      %s29 = int_to_ptr.vmem [resolvable:$true] %s28
      %34 = dma.hbm_to_vmem [thread:$0]  %s1, 256, %s29, [#allocation5], 64, 64, 4
    $region9: #{tpu_custom_call.1} parent=1 // pred_fallthru
      _
    // Predicated region
    $region10: #{tpu_custom_call.1} parent=1 // pred_check
      _
    $region11: #{tpu_custom_call.1} parent=1 // pred_check_branch
      %36 = sbr.rel (0) target = $region13
    $region12: #{tpu_custom_call.1} parent=1 // pred_region
      %s38 = ssub.s32 128, 128
      %39 = vsyncadd [#allocation5], %s38
      %s41 = sshll.u32 [#allocation6], 4
      %s42 = int_to_ptr.vmem [resolvable:$true] %s41
      %44 = dma.hbm_to_vmem [thread:$0]  %s2, 128, %s42, [#allocation5]
    $region13: #{tpu_custom_call.1} parent=1 // pred_fallthru
      _
    // Predicated region
    $region14: #{tpu_custom_call.1} parent=1 // pred_check
      _
    $region15: #{tpu_custom_call.1} parent=1 // pred_check_branch
      %46 = sbr.rel (0) target = $region17
    $region16: #{tpu_custom_call.1} parent=1 // pred_region
      _
    $region17: #{tpu_custom_call.1} parent=1 // pred_fallthru
      _
    // Predicated region
    $region18: #{tpu_custom_call.1} parent=1 // pred_check
      _
    $region19: #{tpu_custom_call.1} parent=1 // pred_check_branch
      %48 = sbr.rel (0) target = $region21
    $region20: #{tpu_custom_call.1} parent=1 // pred_region
      %49 = dma.done [#allocation3], 128
    $region21: #{tpu_custom_call.1} parent=1 // pred_fallthru
      _
    // Predicated region
    $region22: #{tpu_custom_call.1} parent=1 // pred_check
      _
    $region23: #{tpu_custom_call.1} parent=1 // pred_check_branch
      %51 = sbr.rel (0) target = $region25
    $region24: #{tpu_custom_call.1} parent=1 // pred_region
      %52 = dma.done [#allocation5], 256
    $region25: #{tpu_custom_call.1} parent=1 // pred_fallthru
      _
    // Predicated region
    $region26: #{tpu_custom_call.1} parent=1 // pred_check
      _
    $region27: #{tpu_custom_call.1} parent=1 // pred_check_branch
      %54 = sbr.rel (0) target = $region29
    $region28: #{tpu_custom_call.1} parent=1 // pred_region
      %55 = dma.done [#allocation5], 128
    $region29: #{tpu_custom_call.1} parent=1 // pred_fallthru
      _
    %v57 = vld [vmem:[#allocation2] sm:$0xf]
    %v58 = vld [vmem:[#allocation2 + $0x4] sm:$0xf]
    %v59 = vld [vmem:[#allocation4] sm:$0xf]
    %v60 = vld [vmem:[#allocation4 + $0x4] sm:$0xf]
    %v61 = vld [vmem:[#allocation4 + $0x8] sm:$0xf]
    %v62 = vld [vmem:[#allocation4 + $0xc] sm:$0xf]
    %v63 = vlaneseq
    %v64 = vshrl.u32 %v63, 7
    %v65 = vadd.s32 %v64, 8
    %vm66 = vcmp.lt.s32.totalorder %v64, 0
    %v67 = vsub.s32 0, %v64
    %v68 = vsel %vm66, %v67, %v64
    %v69 = vshrl.u32 %v68, 1
    %v70 = vand.u32 %v68, 1
    %v71 = vsub.s32 0, %v70
    %v72 = vsel %vm66, %v71, %v70
    %vm73 = vcmp.lt.s32.totalorder %v65, 0
    %v74 = vsub.s32 0, %v65
    %v75 = vsel %vm73, %v74, %v65
    %v76 = vshrl.u32 %v75, 1
    %v77 = vand.u32 %v75, 1
    %v78 = vsub.s32 0, %v77
    %v79 = vsel %vm73, %v78, %v77
    %vm80 = vcmp.ne.s32.totalorder %v72, 0
    %vm81 = vcmp.ne.s32.totalorder %v79, 0
    %vm82 = vcmp.lt.s32.totalorder %v72, 0
    %vm83 = vcmp.lt.s32.totalorder %v79, 0
    %vm84 = vmand %vm82, %vm80
    %vm85 = vmand %vm83, %vm81
    %v86 = vadd.s32 %v72, 2
    %v87 = vadd.s32 %v79, 2
    %v88 = vsel %vm84, %v86, %v72
    %v89 = vsel %vm85, %v87, %v79
    %v90 = vlaneseq
    %v91 = vand.u32 %v90, 127
    %vm92 = vcmp.eq.s32.totalorder %v88, %v91
    %vm93 = vcmp.eq.s32.totalorder %v89, %v91
    %v94 = vsel %vm92, 1.0, 0.0
    %v95 = vsel %vm93, 1.0, 0.0
    %v96 = vld [vmem:[#allocation6] sm:$0xff]
    %vm97 = vcmask 64512
    %v99 = vsel %vm97, %v94, 0
    %v102 = vsel %vm97, %v95, 0
    %104 = vmatprep.subr.mxu0 0.0
    %105 = vmatpush1.msra.mxu0 %v96
    %106 = vmatprep.subr.mxu0 0.0
    %107 = vmatpush1.msra.mxu0 0.0
    %108 = vmatprep.subr.mxu0 0.0
    %109 = vmatpush1.msra.mxu0 0.0
    %110 = vmatprep.subr.mxu0 0.0
    %111 = vmatpush1.msra.mxu0 0.0
    %112 = vmatprep.subr.mxu0 0.0
    %113 = vmatpush1.msra.mxu0 0.0
    %114 = vmatprep.subr.mxu0 0.0
    %115 = vmatpush1.msra.mxu0 0.0
    %116 = vmatprep.subr.mxu0 0.0
    %117 = vmatpush1.msra.mxu0 0.0
    %118 = vmatprep.subr.mxu0 0.0
    %119 = vmatpush1.msra.mxu0 0.0
    %120 = vmatprep.subr.mxu0 0.0
    %121 = vmatpush1.msra.mxu0 0.0
    %122 = vmatprep.subr.mxu0 0.0
    %123 = vmatpush1.msra.mxu0 0.0
    %124 = vmatprep.subr.mxu0 0.0
    %125 = vmatpush1.msra.mxu0 0.0
    %126 = vmatprep.subr.mxu0 0.0
    %127 = vmatpush1.msra.mxu0 0.0
    %128 = vmatprep.subr.mxu0 0.0
    %129 = vmatpush1.msra.mxu0 0.0
    %130 = vmatprep.subr.mxu0 0.0
    %131 = vmatpush1.msra.mxu0 0.0
    %132 = vmatprep.subr.mxu0 0.0
    %133 = vmatpush1.msra.mxu0 0.0
    %134 = vmatprep.subr.mxu0 0.0
    %135 = vmatpush1.msra.mxu0 0.0
    %136 = vmatprep.subr.mxu0 0.0
    %137 = vmatpush1.msra.mxu0 0.0
    %138 = vmatprep.subr.mxu0 0.0
    %139 = vmatpush1.msra.mxu0 0.0
    %140 = vmatprep.subr.mxu0 0.0
    %141 = vmatpush1.msra.mxu0 0.0
    %142 = vmatprep.subr.mxu0 0.0
    %143 = vmatpush1.msra.mxu0 0.0
    %144 = vmatprep.subr.mxu0 0.0
    %145 = vmatpush1.msra.mxu0 0.0
    %146 = vmatprep.subr.mxu0 0.0
    %147 = vmatpush1.msra.mxu0 0.0
    %148 = vmatprep.subr.mxu0 0.0
    %149 = vmatpush1.msra.mxu0 0.0
    %150 = vmatprep.subr.mxu0 0.0
    %151 = vmatpush1.msra.mxu0 0.0
    %152 = vmatprep.subr.mxu0 0.0
    %153 = vmatpush1.msra.mxu0 0.0
    %154 = vmatprep.subr.mxu0 0.0
    %155 = vmatpush1.msra.mxu0 0.0
    %156 = vmatprep.subr.mxu0 0.0
    %157 = vmatpush1.msra.mxu0 0.0
    %158 = vmatprep.subr.mxu0 0.0
    %159 = vmatpush1.msra.mxu0 0.0
    %160 = vmatprep.subr.mxu0 0.0
    %161 = vmatpush1.msra.mxu0 0.0
    %162 = vmatprep.subr.mxu0 0.0
    %163 = vmatpush1.msra.mxu0 0.0
    %164 = vmatprep.subr.mxu0 0.0
    %165 = vmatpush1.msra.mxu0 0.0
    %166 = vmatprep.subr.mxu0 0.0
    %167 = vmatpush1.msra.mxu0 0.0
    %168 = vmatprep.mubr.f32.mxu0 0.0
    %169 = vmatmul.mubr.f32.gmra.mrb[0].mxu0 %v99
    %v170 = vpop.f32.mrb[0].mxu0
    %v171 = vadd.f32 0.0, %v170
    %v172 = vpop.f32.mrb[0].mxu0
    %173 = vmatprep.mubr.f32.mxu0 0.0
    %174 = vmatmul.mubr.f32.gmra.mrb[0].mxu0 %v102
    %v175 = vpop.f32.mrb[0].mxu0
    %v176 = vadd.f32 0.0, %v175
    %v177 = vpop.f32.mrb[0].mxu0
    %178 = vdwg.mxu0
    %v181 = vunpack.c.l.b16 %v57
    %v182 = vunpack.c.l.b16 %v58
    %v183 = vpack.c.b16 %v182, %v181
    %v188 = vunpack.c.l.b16 %v59
    %v189 = vunpack.c.l.b16 %v60
    %v190 = vunpack.c.l.b16 %v61
    %v191 = vunpack.c.l.b16 %v62
    %v192 = vpack.c.b16 %v189, %v188
    %v193 = vpack.c.b16 %v191, %v190
    %vm196 = vcmask 261120
    %v198 = vsel %vm196, %v183, 0
    %200 = vmatprep.subr.bf16.mxu0 0
    %201 = vmatpush1.bf16.msra.mxu0 %v192
    %202 = vmatprep.subr.bf16.mxu0 0
    %203 = vmatpush1.bf16.msra.mxu0 %v193
    %204 = vmatprep.subr.bf16.mxu0 0
    %205 = vmatpush1.bf16.msra.mxu0 0
    %206 = vmatprep.subr.bf16.mxu0 0
    %207 = vmatpush1.bf16.msra.mxu0 0
    %208 = vmatprep.subr.bf16.mxu0 0
    %209 = vmatpush1.bf16.msra.mxu0 0
    %210 = vmatprep.subr.bf16.mxu0 0
    %211 = vmatpush1.bf16.msra.mxu0 0
    %212 = vmatprep.subr.bf16.mxu0 0
    %213 = vmatpush1.bf16.msra.mxu0 0
    %214 = vmatprep.subr.bf16.mxu0 0
    %215 = vmatpush1.bf16.msra.mxu0 0
    %216 = vmatprep.subr.bf16.mxu0 0
    %217 = vmatpush1.bf16.msra.mxu0 0
    %218 = vmatprep.subr.bf16.mxu0 0
    %219 = vmatpush1.bf16.msra.mxu0 0
    %220 = vmatprep.subr.bf16.mxu0 0
    %221 = vmatpush1.bf16.msra.mxu0 0
    %222 = vmatprep.subr.bf16.mxu0 0
    %223 = vmatpush1.bf16.msra.mxu0 0
    %224 = vmatprep.subr.bf16.mxu0 0
    %225 = vmatpush1.bf16.msra.mxu0 0
    %226 = vmatprep.subr.bf16.mxu0 0
    %227 = vmatpush1.bf16.msra.mxu0 0
    %228 = vmatprep.subr.bf16.mxu0 0
    %229 = vmatpush1.bf16.msra.mxu0 0
    %230 = vmatprep.subr.bf16.mxu0 0
    %231 = vmatpush1.bf16.msra.mxu0 0
    %232 = vmatprep.mubr.bf16.mxu0 0
    %233 = vmatmul.mubr.bf16.gmra.mrb[0].mxu0 %v198
    %v234 = vpop.f32.mrb[0].mxu0
    %v235 = vadd.f32 %v171, %v234
    %v236 = vpop.f32.mrb[0].mxu0
    %v237 = vpop.f32.mrb[0].mxu0
    %v238 = vadd.f32 %v176, %v237
    %v239 = vpop.f32.mrb[0].mxu0
    %240 = vdwg.mxu0
    %v241 = vtanh.pop %v235
    %v242 = vtanh.pop %v238
    %v243 = vld [vmem:[%s3] sm:$0x1]
    %v245 = vlaneseq
    %v246 = vshrl.u32 %v245, 7
    %v247 = vsub.s32 0, %v246
    %v248 = vrot.slane %v243, %v247
    %v250 = vmul.f32 %v241, %v248
    %v251 = vmul.f32 %v242, %v248
    %v252 = vsel %vm196, %v250, 0.0
    %253 = vadd.xlane.f32.xlu0 %v252
    %v254 = vpop.xlane.xlu0 %253
    %v255 = vsel %vm196, %v251, 0.0
    %256 = vadd.xlane.f32.xlu0 %v255
    %v257 = vpop.xlane.xlu0 %256
    %vm258 = vcmask 7168
    %259 = vst.msk [vmem:[%s4] sm:$0xff] %vm258, %v254
    %260 = vst.msk [vmem:[%s4 + $0x8] sm:$0xff] %vm258, %v257
    // Predicated region
    $region30: #{tpu_custom_call.1} parent=1 // pred_check
      _
    $region31: #{tpu_custom_call.1} parent=1 // pred_check_branch
      %262 = sbr.rel (0) target = $region33
    $region32: #{tpu_custom_call.1} parent=1 // pred_region
      _
    $region33: #{tpu_custom_call.1} parent=1 // pred_fallthru
      _
    // Predicated region
    $region34: #{tpu_custom_call.1} parent=1 // pred_check
      _
    $region35: #{tpu_custom_call.1} parent=1 // pred_check_branch
      %264 = sbr.rel (0) target = $region37
    $region36: #{tpu_custom_call.1} parent=1 // pred_region
      _
    $region37: #{tpu_custom_call.1} parent=1 // pred_fallthru
      _
    %265 = vsyncpa [#allocation3], 1
    %266 = vsyncpa [#allocation5], 1

</llo_original>
